<compile_context>
chip_gen: v7x
topology: tpu7x:2x2x1
jax: 0.10.0
libtpu: 0.0.40
codegen_flags: <defaults>
</compile_context>

<pallas_src>
import jax
import jax.numpy as jnp
from jax.experimental import pallas as pl
from jax.experimental.pallas import tpu as pltpu

MAX_VALUE = 11                      # hard-coded in the module's __init__
CHANNEL = 3
EMBED_DIM = 32                      # embedding_dim
VOCAB = CHANNEL * MAX_VALUE         # 33 embedding rows in the PyTorch table
VPAD_C = 16                         # per-channel vocab rows, padded 11 -> 16


def _bow_embed_kernel(idx_ref, emb_ref, out_ref):
    """One grid step: BB images x T pixels.

    idx_ref : (BB, C, T)  int32   raw per-channel cell codes (no offsets)
    emb_ref : (C, D, Vc)  float32 per-channel transposed, zero-padded tables
    out_ref : (BB, D, T)  float32
    """
    bb, c_n, t = idx_ref.shape
    v_c = emb_ref.shape[2]

    # Sublane-axis iota and per-channel table slabs: built once per grid step
    # and reused across the BB images (JAX does not CSE broadcasts).
    row = jax.lax.broadcasted_iota(jnp.int32, (v_c, t), 0)          # (Vc, T)
    tables = [emb_ref[c, :, :] for c in range(c_n)]                 # (D, Vc)

    for b in range(bb):                     # static loop, BB <= 32
        acc = None
        for c in range(c_n):                # static loop, C == 3
            code = idx_ref[b, c:c + 1, :]                           # (1, T)
            onehot = (row == code).astype(jnp.float32)              # (Vc, T)
            # (D, Vc) @ (Vc, T) on the MXU == embedding gather + channel sum,
            # exact in f32 (one-hot is exactly 0/1).
            part = jnp.dot(tables[c], onehot,
                           preferred_element_type=jnp.float32)      # (D, T)
            acc = part if acc is None else acc + part
        out_ref[b, :, :] = acc


def prepare_bow_embedding_table(emb_table, *, channel=CHANNEL,
                                max_value=MAX_VALUE, vpad_c=VPAD_C):
    """(channel*max_value, D) table -> (channel, D, vpad_c) f32, zero-padded.

    Hoisted out of the per-call wrapper: build once per model and reuse.
    """
    v, d = emb_table.shape
    assert v == channel * max_value
    t = emb_table.astype(jnp.float32).reshape(channel, max_value, d)
    t = jnp.transpose(t, (0, 2, 1))                     # (C, D, max_value)
    return jnp.pad(t, ((0, 0), (0, 0), (0, vpad_c - max_value)))


def image_bow_embedding(inputs, emb_cdv, *, max_tile=8192,
                        max_batch_block=32, target_step_bytes=512 * 1024):
    """inputs: (B, C, H, W) int codes in [0, max_value); emb_cdv: (C, D, Vc).

    Returns (B, D, H, W) float32, matching the PyTorch module output.
    """
    B, C, H, W = inputs.shape
    c_e, D, v_c = emb_cdv.shape
    assert C == c_e
    HW = H * W

    # (B, C, H, W) -> (B, C, H*W): pure reshape, no transpose, no extra pass.
    # TODO(synk): codes could be shipped as int8 to shave input HBM bytes on
    # v5e; kept int32 here (input is <10% of total HBM traffic).
    idx = inputs.reshape(B, C, HW).astype(jnp.int32)

    # Pixel tile: full extent when it fits (no padding, no post-slice); else a
    # 128-multiple tile -- the last (partial) block's OOB writes are masked.
    tile = HW if HW <= max_tile else max_tile
    n_t = pl.cdiv(HW, tile)

    # Batch block: amortize the ~0.35us/step overhead by targeting a few
    # hundred KiB of output per step; cap the in-kernel unroll at 32 images.
    px_target = max(1, target_step_bytes // (D * 4))
    bb = max(1, min(B, max_batch_block, pl.cdiv(px_target, tile)))
    # Keep >= 2 grid steps so both v7x TensorCores get work.
    if pl.cdiv(B, bb) * n_t < 2 and B >= 2:
        bb = pl.cdiv(B, 2)
    n_b = pl.cdiv(B, bb)

    out = pl.pallas_call(
        _bow_embed_kernel,
        out_shape=jax.ShapeDtypeStruct((B, D, HW), jnp.float32),
        grid_spec=pltpu.PrefetchScalarGridSpec(
            num_scalar_prefetch=0,
            grid=(n_b, n_t),
            in_specs=[
                # (BB, C, T): channel on sublanes, pixels on lanes.
                pl.BlockSpec((bb, C, tile), lambda i, j: (i, 0, j)),
                # Full (C, D, Vc) table, resident across all grid steps.
                pl.BlockSpec((c_e, D, v_c), lambda i, j: (0, 0, 0)),
            ],
            # (BB, D, T): lane-dense stores straight into NCHW layout.
            out_specs=pl.BlockSpec((bb, D, tile), lambda i, j: (i, 0, j)),
        ),
        compiler_params=pltpu.CompilerParams(
            dimension_semantics=("parallel", "parallel")),
    )(idx, emb_cdv)

    # (B, D, H*W) -> (B, D, H, W): free reshape, no slice, no transpose.
    return out.reshape(B, D, H, W)


def _reference(inputs, emb_table, *, max_value=MAX_VALUE):
    # Pure-JAX reference mirroring the PyTorch forward.
    B, C, H, W = inputs.shape
    offsets = jnp.arange(C, dtype=jnp.int32) * max_value
    idx = inputs + offsets[None, :, None, None]          # (B, C, H, W)
    gathered = emb_table[idx]                            # (B, C, H, W, D)
    return jnp.transpose(gathered.sum(axis=1), (0, 3, 1, 2))


if __name__ == "__main__":
    key = jax.random.PRNGKey(0)
    k_emb, k_in = jax.random.split(key)

    # nn.Embedding default init N(0, 1); initialize_parameters only rescales
    # Linear layers, so the embedding keeps its default init.
    emb_table = jax.random.normal(k_emb, (VOCAB, EMBED_DIM), dtype=jnp.float32)

    # Small example: batch=2, channel=3, spatial=16x16, values in [0, 11).
    B, H, W = 2, 16, 16
    inputs = jax.random.randint(k_in, (B, CHANNEL, H, W), 0, MAX_VALUE,
                                dtype=jnp.int32)

    emb_cdv = prepare_bow_embedding_table(emb_table)     # built once per model

    out = image_bow_embedding(inputs, emb_cdv)
    out = jax.block_until_ready(out)

    ref = _reference(inputs, emb_table)
    assert out.shape == (B, EMBED_DIM, H, W)
    assert jnp.allclose(out, ref, atol=1e-5, rtol=1e-5)

    print("KERNEL_OK")
</pallas_src>

<mosaic_0001>
module attributes {stable_mosaic.version = 11 : i64} {
  func.func @_bow_embed_kernel(%arg0: i32, %arg1: i32, %arg2: memref<1x3x256xi32, #tpu.memory_space<vmem>>, %arg3: memref<3x32x16xf32, #tpu.memory_space<vmem>>, %arg4: memref<1x32x256xf32, #tpu.memory_space<vmem>>) attributes {dimension_semantics = [#tpu.dimension_semantics<parallel>, #tpu.dimension_semantics<parallel>], iteration_bounds = array<i64: 2, 1>, scalar_prefetch = 0 : i64, scratch_operands = 0 : i64, tpu.core_type = #tpu.core_type<tc>, window_params = [{transform_indices = @transform_0, window_bounds = array<i64: 1, 3, 256>}, {pipeline_mode = #tpu.pipeline_mode<synchronous>, transform_indices = @transform_1, window_bounds = array<i64: 3, 32, 16>}, {transform_indices = @transform_2, window_bounds = array<i64: 1, 32, 256>}]} {
    %0 = tpu.iota {dimensions = array<i32: 0>} : vector<16x256xi32>
    %c0 = arith.constant 0 : index
    %c0_0 = arith.constant 0 : index
    %c0_1 = arith.constant 0 : index
    %1 = vector.load %arg3[%c0, %c0_0, %c0_1] : memref<3x32x16xf32, #tpu.memory_space<vmem>>, vector<1x32x16xf32>
    %2 = vector.shape_cast %1 : vector<1x32x16xf32> to vector<32x16xf32>
    %c1 = arith.constant 1 : index
    %c0_2 = arith.constant 0 : index
    %c0_3 = arith.constant 0 : index
    %3 = vector.load %arg3[%c1, %c0_2, %c0_3] : memref<3x32x16xf32, #tpu.memory_space<vmem>>, vector<1x32x16xf32>
    %4 = vector.shape_cast %3 : vector<1x32x16xf32> to vector<32x16xf32>
    %c2 = arith.constant 2 : index
    %c0_4 = arith.constant 0 : index
    %c0_5 = arith.constant 0 : index
    %5 = vector.load %arg3[%c2, %c0_4, %c0_5] : memref<3x32x16xf32, #tpu.memory_space<vmem>>, vector<1x32x16xf32>
    %6 = vector.shape_cast %5 : vector<1x32x16xf32> to vector<32x16xf32>
    %c0_6 = arith.constant 0 : index
    %c0_7 = arith.constant 0 : index
    %c0_8 = arith.constant 0 : index
    %7 = vector.load %arg2[%c0_6, %c0_7, %c0_8] : memref<1x3x256xi32, #tpu.memory_space<vmem>>, vector<1x1x256xi32>
    %8 = vector.shape_cast %7 : vector<1x1x256xi32> to vector<1x256xi32>
    %9 = vector.broadcast %8 : vector<1x256xi32> to vector<16x256xi32>
    %10 = arith.cmpi eq, %0, %9 : vector<16x256xi32>
    %11 = arith.extui %10 : vector<16x256xi1> to vector<16x256xi32>
    %12 = arith.sitofp %11 : vector<16x256xi32> to vector<16x256xf32>
    %cst = arith.constant dense<0.000000e+00> : vector<32x256xf32>
    %13 = tpu.matmul %2, %12, %cst {dimension_numbers = #tpu.dot_dimension_numbers<[1], [0], [0], [1], [0, 0, 1, 1], [], []>} : vector<32x16xf32>, vector<16x256xf32>, vector<32x256xf32> -> vector<32x256xf32>
    %c0_9 = arith.constant 0 : index
    %c1_10 = arith.constant 1 : index
    %c0_11 = arith.constant 0 : index
    %14 = vector.load %arg2[%c0_9, %c1_10, %c0_11] : memref<1x3x256xi32, #tpu.memory_space<vmem>>, vector<1x1x256xi32>
    %15 = vector.shape_cast %14 : vector<1x1x256xi32> to vector<1x256xi32>
    %16 = vector.broadcast %15 : vector<1x256xi32> to vector<16x256xi32>
    %17 = arith.cmpi eq, %0, %16 : vector<16x256xi32>
    %18 = arith.extui %17 : vector<16x256xi1> to vector<16x256xi32>
    %19 = arith.sitofp %18 : vector<16x256xi32> to vector<16x256xf32>
    %cst_12 = arith.constant dense<0.000000e+00> : vector<32x256xf32>
    %20 = tpu.matmul %4, %19, %cst_12 {dimension_numbers = #tpu.dot_dimension_numbers<[1], [0], [0], [1], [0, 0, 1, 1], [], []>} : vector<32x16xf32>, vector<16x256xf32>, vector<32x256xf32> -> vector<32x256xf32>
    %21 = arith.addf %13, %20 : vector<32x256xf32>
    %c0_13 = arith.constant 0 : index
    %c2_14 = arith.constant 2 : index
    %c0_15 = arith.constant 0 : index
    %22 = vector.load %arg2[%c0_13, %c2_14, %c0_15] : memref<1x3x256xi32, #tpu.memory_space<vmem>>, vector<1x1x256xi32>
    %23 = vector.shape_cast %22 : vector<1x1x256xi32> to vector<1x256xi32>
    %24 = vector.broadcast %23 : vector<1x256xi32> to vector<16x256xi32>
    %25 = arith.cmpi eq, %0, %24 : vector<16x256xi32>
    %26 = arith.extui %25 : vector<16x256xi1> to vector<16x256xi32>
    %27 = arith.sitofp %26 : vector<16x256xi32> to vector<16x256xf32>
    %cst_16 = arith.constant dense<0.000000e+00> : vector<32x256xf32>
    %28 = tpu.matmul %6, %27, %cst_16 {dimension_numbers = #tpu.dot_dimension_numbers<[1], [0], [0], [1], [0, 0, 1, 1], [], []>} : vector<32x16xf32>, vector<16x256xf32>, vector<32x256xf32> -> vector<32x256xf32>
    %29 = arith.addf %21, %28 : vector<32x256xf32>
    %c0_17 = arith.constant 0 : index
    %c0_18 = arith.constant 0 : index
    %c0_19 = arith.constant 0 : index
    %30 = vector.load %arg4[%c0_17, %c0_18, %c0_19] : memref<1x32x256xf32, #tpu.memory_space<vmem>>, vector<1x32x256xf32>
    %31 = vector.shape_cast %30 : vector<1x32x256xf32> to vector<32x256xf32>
    %32 = vector.shape_cast %29 : vector<32x256xf32> to vector<1x32x256xf32>
    tpu.vector_store %arg4[%c0_17, %c0_18, %c0_19], %32 {strides = array<i32>} : memref<1x32x256xf32, #tpu.memory_space<vmem>>, vector<1x32x256xf32>,
    return
  }
  func.func @transform_0(%arg0: i32, %arg1: i32) -> (i32, i32, i32) {
    %c0_i32 = arith.constant 0 : i32
    %c0_i32_0 = arith.constant 0 : i32
    return %arg0, %c0_i32, %arg1 : i32, i32, i32
  }
  func.func @transform_1(%arg0: i32, %arg1: i32) -> (i32, i32, i32) {
    %c0_i32 = arith.constant 0 : i32
    %c0_i32_0 = arith.constant 0 : i32
    %c0_i32_1 = arith.constant 0 : i32
    %c0_i32_2 = arith.constant 0 : i32
    return %c0_i32, %c0_i32_0, %c0_i32_1 : i32, i32, i32
  }
  func.func @transform_2(%arg0: i32, %arg1: i32) -> (i32, i32, i32) {
    %c0_i32 = arith.constant 0 : i32
    %c0_i32_0 = arith.constant 0 : i32
    return %arg0, %c0_i32, %arg1 : i32, i32, i32
  }
}

</mosaic_0001>

<llo_original>
// kernel: tpu_custom_call.1
$region0: #{tpu_custom_call.1}
  #allocation0 [shape = 'u32[]', space=smem, size = 0x4, offset = 0x4, fixed_abs, tag = 'smem constant byte address 0x4 - core index']
  #allocation1 [shape = 'u32[144,128]{1,0:T(1,128)}', space=vmem, size = 0x12000, scoped, tag = 'internal scratch']
  %s0 = inlined_call_operand.vmem [shape: s32[2,3,256], index: 0, kind: input, shape index: {}]
  %s1 = inlined_call_operand.vmem [shape: f32[3,32,16], index: 1, kind: input, shape index: {}]
  %s2 = inlined_call_operand.hbm [shape: f32[2,32,256], index: 2, kind: output, shape index: {}]
  %s3 = sld [smem:[#allocation0]]
  $region41: #{tpu_custom_call.1} parent=0
    _
  %s5 = ssub.s32 1, %s3
  %s6 = scalar_select 0, %s5, %s3
  $region1: #{tpu_custom_call.1} parent=0
    #allocation2 [shape = 'u8[65536]{0}', space=vmem, size = 0x10000, scoped, tag = 'output window, operand 0']
    #allocation3 [shape = 's32[2]{0}', space=sflag, size = 0x8, scoped, tag = 'scoped memory for tpu_custom_call.1']
    %7 = vsyncpa [#allocation3], 0
    %s8 = scalar_lea.sflag [#allocation3], 1
    %9 = vsyncpa %s8, 0
    loop: start=0, step=1, limit=4
    $region2: #{tpu_custom_call.1} parent=1 // loop_pre_header
      _
    $region3: #{tpu_custom_call.1} parent=1 // loop_header
      %s11 = sphi 0, %s15
      %p12 = scmp.ge.s32.totalorder %s11, 4
      %s18 = sphi 0, %s30
      %s19 = sphi 0, %s26
      %s20 = sphi 0, %s18
      %s21 = sphi 0, %s19
      %s22 = sphi 0, %s20
      %s23 = sphi 0, %s21
      %s35 = sphi 0, %s37
      %s38 = sphi 0, %s35
      %s39 = sphi 0, %s38
      %s55 = sphi 0, %s39
      %s59 = sphi 0, %s59
      %s61 = sphi 0, %s59
      %s62 = sphi 0, %s61
      %s76 = sphi 0, %s62
      %s84 = sphi 0, %s86
      %s87 = sphi 0, %s84
      %s88 = sphi 0, %s87
      %s104 = sphi 0, %s88
    $region4: #{tpu_custom_call.1} parent=1 // loop_header_branch
      %14 = sbr.rel (%p12) target = $region8
    $region5: #{tpu_custom_call.1} parent=1 // loop_body
      %s16 = ssub.s32 %s11, 1
      %s17 = ssub.s32 %s11, 2
      %s24 = sadd.s32 1, %s19
      %p25 = scmp.ge.s32.totalorder %s24, 1
      %s26 = scalar_select %p25, 0, %s24
      %s27 = sadd.s32 1, %s18
      %s28 = scalar_select %p25, %s27, %s18
      %p29 = scmp.ge.s32.totalorder %s28, 2
      %s30 = scalar_select %p29, 0, %s28
      %s31 = ssub.s32 %s18, %s30
      %s32 = ssub.s32 %s19, %s26
      %s33 = sor.u32 %s31, %s32
      %p34 = scmp.eq.s32.totalorder %s33, 0
      %s36 = sadd.s32 %s35, 1
      %s37 = scalar_select %p34, %s35, %s36
      %p40 = pneg %p34
      %p41 = scmp.eq.s32.totalorder %s11, 1
      %p42 = por %p40, %p41
      %p43 = scmp.ne.s32.totalorder %s35, %s38
      %p44 = scmp.eq.s32.totalorder %s11, 0
      %p45 = por %p43, %p44
      %p46 = scmp.ne.s32.totalorder %s35, %s38
      %p47 = scmp.eq.s32.totalorder %s16, 1
      %p48 = por %p46, %p47
      %p49 = scmp.ne.s32.totalorder %s38, %s39
      %p50 = scmp.eq.s32.totalorder %s16, 0
      %p51 = por %p49, %p50
      %p52 = scmp.ne.s32.totalorder %s38, %s39
      %p53 = scmp.eq.s32.totalorder %s17, 1
      %p54 = por %p52, %p53
      %p56 = scmp.ne.s32.totalorder %s39, %s55
      %p57 = scmp.eq.s32.totalorder %s17, 0
      %p58 = por %p56, %p57
      %s60 = sadd.s32 %s59, 1
      %p63 = scmp.eq.s32.totalorder %s11, 1
      %p64 = scmp.ne.s32.totalorder %s59, %s61
      %p65 = scmp.eq.s32.totalorder %s11, 0
      %p66 = por %p64, %p65
      %p67 = scmp.ne.s32.totalorder %s59, %s61
      %p68 = scmp.eq.s32.totalorder %s16, 1
      %p69 = por %p67, %p68
      %p70 = scmp.ne.s32.totalorder %s61, %s62
      %p71 = scmp.eq.s32.totalorder %s16, 0
      %p72 = por %p70, %p71
      %p73 = scmp.ne.s32.totalorder %s61, %s62
      %p74 = scmp.eq.s32.totalorder %s17, 1
      %p75 = por %p73, %p74
      %p77 = scmp.ne.s32.totalorder %s62, %s76
      %p78 = scmp.eq.s32.totalorder %s17, 0
      %p79 = por %p77, %p78
      %s80 = ssub.s32 %s18, %s30
      %s81 = ssub.s32 %s19, %s26
      %s82 = sor.u32 %s80, %s81
      %p83 = scmp.eq.s32.totalorder %s82, 0
      %s85 = sadd.s32 %s84, 1
      %s86 = scalar_select %p83, %s84, %s85
      %p89 = pneg %p83
      %p90 = scmp.eq.s32.totalorder %s11, 1
      %p91 = por %p89, %p90
      %p92 = scmp.ne.s32.totalorder %s84, %s87
      %p93 = scmp.eq.s32.totalorder %s11, 0
      %p94 = por %p92, %p93
      %p95 = scmp.ne.s32.totalorder %s84, %s87
      %p96 = scmp.eq.s32.totalorder %s16, 1
      %p97 = por %p95, %p96
      %p98 = scmp.ne.s32.totalorder %s87, %s88
      %p99 = scmp.eq.s32.totalorder %s16, 0
      %p100 = por %p98, %p99
      %p101 = scmp.ne.s32.totalorder %s87, %s88
      %p102 = scmp.eq.s32.totalorder %s17, 1
      %p103 = por %p101, %p102
      %p105 = scmp.ne.s32.totalorder %s88, %s104
      %p106 = scmp.eq.s32.totalorder %s17, 0
      %p107 = por %p105, %p106
      %p108 = scmp.le.s32.totalorder 1, %s11
      %p109 = scmp.lt.s32.totalorder %s11, 3
      %p110 = pnand %p108, %p109
      %p111 = pneg %p110
      // Predicated region
      $region9: #{tpu_custom_call.1} parent=5 // pred_check
        _
      $region10: #{tpu_custom_call.1} parent=5 // pred_check_branch
        %113 = sbr.rel (%p110) target = $region12
      $region11: #{tpu_custom_call.1} parent=5 // pred_region
        %s114 = ssub.s32 %s11, 1
        // Predicated region
        $region13: #{tpu_custom_call.1} parent=11 // pred_check
          %p115 = pneg %p72
        $region14: #{tpu_custom_call.1} parent=11 // pred_check_branch
          %117 = sbr.rel (%p115) target = $region16
        $region15: #{tpu_custom_call.1} parent=11 // pred_region
          _
        $region16: #{tpu_custom_call.1} parent=11 // pred_fallthru
          _
      $region12: #{tpu_custom_call.1} parent=5 // pred_fallthru
        _
      %p118 = scmp.lt.s32.totalorder %s11, 2
      // Predicated region
      $region17: #{tpu_custom_call.1} parent=5 // pred_check
        %p119 = pneg %p118
      $region18: #{tpu_custom_call.1} parent=5 // pred_check_branch
        %121 = sbr.rel (%p119) target = $region20
      $region19: #{tpu_custom_call.1} parent=5 // pred_region
        // Predicated region
        $region21: #{tpu_custom_call.1} parent=19 // pred_check
          %p122 = pneg %p45
        $region22: #{tpu_custom_call.1} parent=19 // pred_check_branch
          %124 = sbr.rel (%p122) target = $region24
        $region23: #{tpu_custom_call.1} parent=19 // pred_region
          %s125 = smul.u32 2, %s19
          %p126 = scmp.lt.s32.totalorder %s18, 1
          %s127 = scalar_select %p126, %s18, 1
          %p128 = scmp.lt.s32.totalorder %s125, 1
          %s129 = scalar_select %p128, %s125, 1
          %s130 = smul.addr %s127, 2
          %s131 = sadd.s32 %s129, %s130
          %s132 = smul.addr %s131, 4
          %s133 = scalar_lea.vmem %s0, %s132
          %s134 = smul.u32 2, %s19
        $region24: #{tpu_custom_call.1} parent=19 // pred_fallthru
          _
      $region20: #{tpu_custom_call.1} parent=5 // pred_fallthru
        _
      %p135 = scmp.le.s32.totalorder 1, %s11
      %p136 = scmp.lt.s32.totalorder %s11, 3
      %p137 = pnand %p135, %p136
      %p138 = pneg %p137
      // Predicated region
      $region25: #{tpu_custom_call.1} parent=5 // pred_check
        _
      $region26: #{tpu_custom_call.1} parent=5 // pred_check_branch
        %140 = sbr.rel (%p137) target = $region28
      $region27: #{tpu_custom_call.1} parent=5 // pred_region
        %s141 = ssub.s32 %s11, 1
        %s142 = smul.u32 2, %s21
        %p143 = scmp.lt.s32.totalorder %s20, 1
        %s144 = scalar_select %p143, %s20, 1
        %p145 = scmp.lt.s32.totalorder %s142, 1
        %s146 = scalar_select %p145, %s142, 1
        %s147 = smul.addr %s144, 2
        %s148 = sadd.s32 %s146, %s147
        %s149 = smul.addr %s148, 4
        %s150 = scalar_lea.vmem %s0, %s149
        %p151 = pneg %p51
        %p152 = pneg %p48
        %p153 = pneg %p72
        %p154 = pneg %p69
        %p155 = pneg %p100
        %p156 = pneg %p97
        %s157 = sand.u32 %s87, 1
        %s158 = scalar_lea.sflag [#allocation3], %s157
        %s159 = sand.u32 %s87, 1
        %s160 = smul.addr %s159, 64
        %s161 = scalar_lea.vmem [#allocation2], %s160
        %s162 = smul.u32 2, %s21
        %p163 = scmp.lt.s32.totalorder %s20, 1
        %s164 = scalar_select %p163, %s20, 1
        %p165 = scmp.lt.s32.totalorder %s162, 1
        %s166 = scalar_select %p165, %s162, 1
        %s167 = smul.addr %s164, 2
        %s168 = sadd.s32 %s166, %s167
        %s169 = smul.addr %s168, 4
        %s170 = scalar_lea.vmem %s0, %s169
        %s171 = smul.u32 2, %s21
        %s172 = smul.u32 2, %s21
        %v173 = vlaneseq
        %v174 = vshrl.u32 %v173, 7
        %v175 = vadd.s32 %v174, 8
        %v176 = vld [vmem:[%s1] sm:$0xff]
        %v177 = vld [vmem:[%s1 + $0x8] sm:$0xff]
        %v178 = vld [vmem:[%s1 + $0x10] sm:$0xff]
        %v179 = vld [vmem:[%s1 + $0x18] sm:$0xff]
        %s180 = scalar_lea.vmem %s1, 32
        %v181 = vld [vmem:[%s180] sm:$0xff]
        %v182 = vld [vmem:[%s180 + $0x8] sm:$0xff]
        %v183 = vld [vmem:[%s180 + $0x10] sm:$0xff]
        %v184 = vld [vmem:[%s180 + $0x18] sm:$0xff]
        %s185 = scalar_lea.vmem %s1, 64
        %v186 = vld [vmem:[%s185] sm:$0xff]
        %v187 = vld [vmem:[%s185 + $0x8] sm:$0xff]
        %v188 = vld [vmem:[%s185 + $0x10] sm:$0xff]
        %v189 = vld [vmem:[%s185 + $0x18] sm:$0xff]
        %v190 = vld [vmem:[%s170] ss:$4 sm:$0x3]
        %v191 = vlaneseq
        %v192 = vshrl.u32 %v191, 7
        %v193 = vsub.s32 0, %v192
        %v194 = vrot.slane %v190, %v193
        %v195 = vlaneseq
        %v196 = vshrl.u32 %v195, 7
        %v197 = vsub.s32 1, %v196
        %v198 = vrot.slane %v190, %v197
        %vm199 = vcmp.eq.s32.totalorder %v174, %v194
        %vm200 = vcmp.eq.s32.totalorder %v174, %v198
        %vm201 = vcmp.eq.s32.totalorder %v175, %v194
        %vm202 = vcmp.eq.s32.totalorder %v175, %v198
        %v203 = vsel %vm199, 1, 0
        %v204 = vsel %vm200, 1, 0
        %v205 = vsel %vm201, 1, 0
        %v206 = vsel %vm202, 1, 0
        %v207 = vcvt.s32.f32 %v203
        %v208 = vcvt.s32.f32 %v204
        %v209 = vcvt.s32.f32 %v205
        %v210 = vcvt.s32.f32 %v206
        %s211 = scalar_lea.vmem %s170, 1
        %v212 = vld [vmem:[%s211] ss:$4 sm:$0x3]
        %v213 = vlaneseq
        %v214 = vshrl.u32 %v213, 7
        %v215 = vsub.s32 0, %v214
        %v216 = vrot.slane %v212, %v215
        %v217 = vlaneseq
        %v218 = vshrl.u32 %v217, 7
        %v219 = vsub.s32 1, %v218
        %v220 = vrot.slane %v212, %v219
        %vm221 = vcmp.eq.s32.totalorder %v174, %v216
        %vm222 = vcmp.eq.s32.totalorder %v174, %v220
        %vm223 = vcmp.eq.s32.totalorder %v175, %v216
        %vm224 = vcmp.eq.s32.totalorder %v175, %v220
        %v225 = vsel %vm221, 1, 0
        %v226 = vsel %vm222, 1, 0
        %v227 = vsel %vm223, 1, 0
        %v228 = vsel %vm224, 1, 0
        %v229 = vcvt.s32.f32 %v225
        %v230 = vcvt.s32.f32 %v226
        %v231 = vcvt.s32.f32 %v227
        %v232 = vcvt.s32.f32 %v228
        %vm233 = vcmask 130048
        %v235 = vsel %vm233, %v181, 0
        %v238 = vsel %vm233, %v182, 0
        %v241 = vsel %vm233, %v183, 0
        %v244 = vsel %vm233, %v184, 0
        %246 = vmatprep.subr.mxu0 %v230
        %247 = vmatpush1.msra.mxu0 %v229
        %248 = vmatprep.subr.mxu0 %v232
        %249 = vmatpush1.msra.mxu0 %v231
        %250 = vmatprep.subr.mxu0 0.0
        %251 = vmatpush1.msra.mxu0 0.0
        %252 = vmatprep.subr.mxu0 0.0
        %253 = vmatpush1.msra.mxu0 0.0
        %254 = vmatprep.subr.mxu0 0.0
        %255 = vmatpush1.msra.mxu0 0.0
        %256 = vmatprep.subr.mxu0 0.0
        %257 = vmatpush1.msra.mxu0 0.0
        %258 = vmatprep.subr.mxu0 0.0
        %259 = vmatpush1.msra.mxu0 0.0
        %260 = vmatprep.subr.mxu0 0.0
        %261 = vmatpush1.msra.mxu0 0.0
        %262 = vmatprep.subr.mxu0 0.0
        %263 = vmatpush1.msra.mxu0 0.0
        %264 = vmatprep.subr.mxu0 0.0
        %265 = vmatpush1.msra.mxu0 0.0
        %266 = vmatprep.subr.mxu0 0.0
        %267 = vmatpush1.msra.mxu0 0.0
        %268 = vmatprep.subr.mxu0 0.0
        %269 = vmatpush1.msra.mxu0 0.0
        %270 = vmatprep.subr.mxu0 0.0
        %271 = vmatpush1.msra.mxu0 0.0
        %272 = vmatprep.subr.mxu0 0.0
        %273 = vmatpush1.msra.mxu0 0.0
        %274 = vmatprep.subr.mxu0 0.0
        %275 = vmatpush1.msra.mxu0 0.0
        %276 = vmatprep.subr.mxu0 0.0
        %277 = vmatpush1.msra.mxu0 0.0
        %278 = vmatprep.subr.mxu0 0.0
        %279 = vmatpush1.msra.mxu0 0.0
        %280 = vmatprep.subr.mxu0 0.0
        %281 = vmatpush1.msra.mxu0 0.0
        %282 = vmatprep.subr.mxu0 0.0
        %283 = vmatpush1.msra.mxu0 0.0
        %284 = vmatprep.subr.mxu0 0.0
        %285 = vmatpush1.msra.mxu0 0.0
        %286 = vmatprep.subr.mxu0 0.0
        %287 = vmatpush1.msra.mxu0 0.0
        %288 = vmatprep.subr.mxu0 0.0
        %289 = vmatpush1.msra.mxu0 0.0
        %290 = vmatprep.subr.mxu0 0.0
        %291 = vmatpush1.msra.mxu0 0.0
        %292 = vmatprep.subr.mxu0 0.0
        %293 = vmatpush1.msra.mxu0 0.0
        %294 = vmatprep.subr.mxu0 0.0
        %295 = vmatpush1.msra.mxu0 0.0
        %296 = vmatprep.subr.mxu0 0.0
        %297 = vmatpush1.msra.mxu0 0.0
        %298 = vmatprep.subr.mxu0 0.0
        %299 = vmatpush1.msra.mxu0 0.0
        %300 = vmatprep.subr.mxu0 0.0
        %301 = vmatpush1.msra.mxu0 0.0
        %302 = vmatprep.subr.mxu0 0.0
        %303 = vmatpush1.msra.mxu0 0.0
        %304 = vmatprep.subr.mxu0 0.0
        %305 = vmatpush1.msra.mxu0 0.0
        %306 = vmatprep.subr.mxu0 0.0
        %307 = vmatpush1.msra.mxu0 0.0
        %308 = vmatprep.subr.mxu0 0.0
        %309 = vmatpush1.msra.mxu0 0.0
        %310 = vmatprep.mubr.f32.mxu0 0.0
        %311 = vmatmul.mubr.f32.gmra.mrb[0].mxu0 %v235
        %v312 = vpop.f32.mrb[0].mxu0
        %v313 = vadd.f32 0.0, %v312
        %v314 = vpop.f32.mrb[0].mxu0
        %v315 = vadd.f32 0.0, %v314
        %316 = vmatprep.mubr.f32.mxu0 0.0
        %317 = vmatmul.mubr.f32.gmra.mrb[0].mxu0 %v238
        %v318 = vpop.f32.mrb[0].mxu0
        %v319 = vadd.f32 0.0, %v318
        %v320 = vpop.f32.mrb[0].mxu0
        %v321 = vadd.f32 0.0, %v320
        %322 = vmatprep.mubr.f32.mxu0 0.0
        %323 = vmatmul.mubr.f32.gmra.mrb[0].mxu0 %v241
        %v324 = vpop.f32.mrb[0].mxu0
        %v325 = vadd.f32 0.0, %v324
        %v326 = vpop.f32.mrb[0].mxu0
        %v327 = vadd.f32 0.0, %v326
        %328 = vmatprep.mubr.f32.mxu0 0.0
        %329 = vmatmul.mubr.f32.gmra.mrb[0].mxu0 %v244
        %v330 = vpop.f32.mrb[0].mxu0
        %v331 = vadd.f32 0.0, %v330
        %v332 = vpop.f32.mrb[0].mxu0
        %v333 = vadd.f32 0.0, %v332
        %334 = vdwg.mxu0
        %v336 = vsel %vm233, %v176, 0
        %v339 = vsel %vm233, %v177, 0
        %v342 = vsel %vm233, %v178, 0
        %v345 = vsel %vm233, %v179, 0
        %347 = vmatprep.subr.mxu0 %v208
        %348 = vmatpush1.msra.mxu0 %v207
        %349 = vmatprep.subr.mxu0 %v210
        %350 = vmatpush1.msra.mxu0 %v209
        %351 = vmatprep.subr.mxu0 0.0
        %352 = vmatpush1.msra.mxu0 0.0
        %353 = vmatprep.subr.mxu0 0.0
        %354 = vmatpush1.msra.mxu0 0.0
        %355 = vmatprep.subr.mxu0 0.0
        %356 = vmatpush1.msra.mxu0 0.0
        %357 = vmatprep.subr.mxu0 0.0
        %358 = vmatpush1.msra.mxu0 0.0
        %359 = vmatprep.subr.mxu0 0.0
        %360 = vmatpush1.msra.mxu0 0.0
        %361 = vmatprep.subr.mxu0 0.0
        %362 = vmatpush1.msra.mxu0 0.0
        %363 = vmatprep.subr.mxu0 0.0
        %364 = vmatpush1.msra.mxu0 0.0
        %365 = vmatprep.subr.mxu0 0.0
        %366 = vmatpush1.msra.mxu0 0.0
        %367 = vmatprep.subr.mxu0 0.0
        %368 = vmatpush1.msra.mxu0 0.0
        %369 = vmatprep.subr.mxu0 0.0
        %370 = vmatpush1.msra.mxu0 0.0
        %371 = vmatprep.subr.mxu0 0.0
        %372 = vmatpush1.msra.mxu0 0.0
        %373 = vmatprep.subr.mxu0 0.0
        %374 = vmatpush1.msra.mxu0 0.0
        %375 = vmatprep.subr.mxu0 0.0
        %376 = vmatpush1.msra.mxu0 0.0
        %377 = vmatprep.subr.mxu0 0.0
        %378 = vmatpush1.msra.mxu0 0.0
        %379 = vmatprep.subr.mxu0 0.0
        %380 = vmatpush1.msra.mxu0 0.0
        %381 = vmatprep.subr.mxu0 0.0
        %382 = vmatpush1.msra.mxu0 0.0
        %383 = vmatprep.subr.mxu0 0.0
        %384 = vmatpush1.msra.mxu0 0.0
        %385 = vmatprep.subr.mxu0 0.0
        %386 = vmatpush1.msra.mxu0 0.0
        %387 = vmatprep.subr.mxu0 0.0
        %388 = vmatpush1.msra.mxu0 0.0
        %389 = vmatprep.subr.mxu0 0.0
        %390 = vmatpush1.msra.mxu0 0.0
        %391 = vmatprep.subr.mxu0 0.0
        %392 = vmatpush1.msra.mxu0 0.0
        %393 = vmatprep.subr.mxu0 0.0
        %394 = vmatpush1.msra.mxu0 0.0
        %395 = vmatprep.subr.mxu0 0.0
        %396 = vmatpush1.msra.mxu0 0.0
        %397 = vmatprep.subr.mxu0 0.0
        %398 = vmatpush1.msra.mxu0 0.0
        %399 = vmatprep.subr.mxu0 0.0
        %400 = vmatpush1.msra.mxu0 0.0
        %401 = vmatprep.subr.mxu0 0.0
        %402 = vmatpush1.msra.mxu0 0.0
        %403 = vmatprep.subr.mxu0 0.0
        %404 = vmatpush1.msra.mxu0 0.0
        %405 = vmatprep.subr.mxu0 0.0
        %406 = vmatpush1.msra.mxu0 0.0
        %407 = vmatprep.subr.mxu0 0.0
        %408 = vmatpush1.msra.mxu0 0.0
        %409 = vmatprep.subr.mxu0 0.0
        %410 = vmatpush1.msra.mxu0 0.0
        %411 = vmatprep.mubr.f32.mxu0 0.0
        %412 = vmatmul.mubr.f32.gmra.mrb[0].mxu0 %v336
        %v413 = vpop.f32.mrb[0].mxu0
        %v414 = vadd.f32 %v313, %v413
        %v415 = vpop.f32.mrb[0].mxu0
        %v416 = vadd.f32 %v315, %v415
        %417 = vmatprep.mubr.f32.mxu0 0.0
        %418 = vmatmul.mubr.f32.gmra.mrb[0].mxu0 %v339
        %v419 = vpop.f32.mrb[0].mxu0
        %v420 = vadd.f32 %v319, %v419
        %v421 = vpop.f32.mrb[0].mxu0
        %v422 = vadd.f32 %v321, %v421
        %423 = vmatprep.mubr.f32.mxu0 0.0
        %424 = vmatmul.mubr.f32.gmra.mrb[0].mxu0 %v342
        %v425 = vpop.f32.mrb[0].mxu0
        %v426 = vadd.f32 %v325, %v425
        %v427 = vpop.f32.mrb[0].mxu0
        %v428 = vadd.f32 %v327, %v427
        %429 = vmatprep.mubr.f32.mxu0 0.0
        %430 = vmatmul.mubr.f32.gmra.mrb[0].mxu0 %v345
        %v431 = vpop.f32.mrb[0].mxu0
        %v432 = vadd.f32 %v331, %v431
        %v433 = vpop.f32.mrb[0].mxu0
        %v434 = vadd.f32 %v333, %v433
        %435 = vdwg.mxu0
        %s436 = scalar_lea.vmem %s170, 2
        %v437 = vld [vmem:[%s436] ss:$4 sm:$0x3]
        %v438 = vlaneseq
        %v439 = vshrl.u32 %v438, 7
        %v440 = vsub.s32 0, %v439
        %v441 = vrot.slane %v437, %v440
        %v442 = vlaneseq
        %v443 = vshrl.u32 %v442, 7
        %v444 = vsub.s32 1, %v443
        %v445 = vrot.slane %v437, %v444
        %vm446 = vcmp.eq.s32.totalorder %v174, %v441
        %vm447 = vcmp.eq.s32.totalorder %v174, %v445
        %vm448 = vcmp.eq.s32.totalorder %v175, %v441
        %vm449 = vcmp.eq.s32.totalorder %v175, %v445
        %v450 = vsel %vm446, 1, 0
        %v451 = vsel %vm447, 1, 0
        %v452 = vsel %vm448, 1, 0
        %v453 = vsel %vm449, 1, 0
        %v454 = vcvt.s32.f32 %v450
        %v455 = vcvt.s32.f32 %v451
        %v456 = vcvt.s32.f32 %v452
        %v457 = vcvt.s32.f32 %v453
        %v459 = vsel %vm233, %v186, 0
        %v462 = vsel %vm233, %v187, 0
        %v465 = vsel %vm233, %v188, 0
        %v468 = vsel %vm233, %v189, 0
        %470 = vmatprep.subr.mxu0 %v455
        %471 = vmatpush1.msra.mxu0 %v454
        %472 = vmatprep.subr.mxu0 %v457
        %473 = vmatpush1.msra.mxu0 %v456
        %474 = vmatprep.subr.mxu0 0.0
        %475 = vmatpush1.msra.mxu0 0.0
        %476 = vmatprep.subr.mxu0 0.0
        %477 = vmatpush1.msra.mxu0 0.0
        %478 = vmatprep.subr.mxu0 0.0
        %479 = vmatpush1.msra.mxu0 0.0
        %480 = vmatprep.subr.mxu0 0.0
        %481 = vmatpush1.msra.mxu0 0.0
        %482 = vmatprep.subr.mxu0 0.0
        %483 = vmatpush1.msra.mxu0 0.0
        %484 = vmatprep.subr.mxu0 0.0
        %485 = vmatpush1.msra.mxu0 0.0
        %486 = vmatprep.subr.mxu0 0.0
        %487 = vmatpush1.msra.mxu0 0.0
        %488 = vmatprep.subr.mxu0 0.0
        %489 = vmatpush1.msra.mxu0 0.0
        %490 = vmatprep.subr.mxu0 0.0
        %491 = vmatpush1.msra.mxu0 0.0
        %492 = vmatprep.subr.mxu0 0.0
        %493 = vmatpush1.msra.mxu0 0.0
        %494 = vmatprep.subr.mxu0 0.0
        %495 = vmatpush1.msra.mxu0 0.0
        %496 = vmatprep.subr.mxu0 0.0
        %497 = vmatpush1.msra.mxu0 0.0
        %498 = vmatprep.subr.mxu0 0.0
        %499 = vmatpush1.msra.mxu0 0.0
        %500 = vmatprep.subr.mxu0 0.0
        %501 = vmatpush1.msra.mxu0 0.0
        %502 = vmatprep.subr.mxu0 0.0
        %503 = vmatpush1.msra.mxu0 0.0
        %504 = vmatprep.subr.mxu0 0.0
        %505 = vmatpush1.msra.mxu0 0.0
        %506 = vmatprep.subr.mxu0 0.0
        %507 = vmatpush1.msra.mxu0 0.0
        %508 = vmatprep.subr.mxu0 0.0
        %509 = vmatpush1.msra.mxu0 0.0
        %510 = vmatprep.subr.mxu0 0.0
        %511 = vmatpush1.msra.mxu0 0.0
        %512 = vmatprep.subr.mxu0 0.0
        %513 = vmatpush1.msra.mxu0 0.0
        %514 = vmatprep.subr.mxu0 0.0
        %515 = vmatpush1.msra.mxu0 0.0
        %516 = vmatprep.subr.mxu0 0.0
        %517 = vmatpush1.msra.mxu0 0.0
        %518 = vmatprep.subr.mxu0 0.0
        %519 = vmatpush1.msra.mxu0 0.0
        %520 = vmatprep.subr.mxu0 0.0
        %521 = vmatpush1.msra.mxu0 0.0
        %522 = vmatprep.subr.mxu0 0.0
        %523 = vmatpush1.msra.mxu0 0.0
        %524 = vmatprep.subr.mxu0 0.0
        %525 = vmatpush1.msra.mxu0 0.0
        %526 = vmatprep.subr.mxu0 0.0
        %527 = vmatpush1.msra.mxu0 0.0
        %528 = vmatprep.subr.mxu0 0.0
        %529 = vmatpush1.msra.mxu0 0.0
        %530 = vmatprep.subr.mxu0 0.0
        %531 = vmatpush1.msra.mxu0 0.0
        %532 = vmatprep.subr.mxu0 0.0
        %533 = vmatpush1.msra.mxu0 0.0
        %534 = vmatprep.mubr.f32.mxu0 0.0
        %535 = vmatmul.mubr.f32.gmra.mrb[0].mxu0 %v459
        %v536 = vpop.f32.mrb[0].mxu0
        %v537 = vadd.f32 0.0, %v536
        %v538 = vpop.f32.mrb[0].mxu0
        %v539 = vadd.f32 0.0, %v538
        %540 = vmatprep.mubr.f32.mxu0 0.0
        %541 = vmatmul.mubr.f32.gmra.mrb[0].mxu0 %v462
        %v542 = vpop.f32.mrb[0].mxu0
        %v543 = vadd.f32 0.0, %v542
        %v544 = vpop.f32.mrb[0].mxu0
        %v545 = vadd.f32 0.0, %v544
        %546 = vmatprep.mubr.f32.mxu0 0.0
        %547 = vmatmul.mubr.f32.gmra.mrb[0].mxu0 %v465
        %v548 = vpop.f32.mrb[0].mxu0
        %v549 = vadd.f32 0.0, %v548
        %v550 = vpop.f32.mrb[0].mxu0
        %v551 = vadd.f32 0.0, %v550
        %552 = vmatprep.mubr.f32.mxu0 0.0
        %553 = vmatmul.mubr.f32.gmra.mrb[0].mxu0 %v468
        %v554 = vpop.f32.mrb[0].mxu0
        %v555 = vadd.f32 0.0, %v554
        %v556 = vpop.f32.mrb[0].mxu0
        %v557 = vadd.f32 0.0, %v556
        %558 = vdwg.mxu0
        %v559 = vadd.f32 %v414, %v537
        %v560 = vadd.f32 %v416, %v539
        %v561 = vadd.f32 %v420, %v543
        %v562 = vadd.f32 %v422, %v545
        %v563 = vadd.f32 %v426, %v549
        %v564 = vadd.f32 %v428, %v551
        %v565 = vadd.f32 %v432, %v555
        %v566 = vadd.f32 %v434, %v557
        %567 = vst [vmem:[%s161] sm:$0xff] %v559
        %568 = vst [vmem:[%s161 + $0x8] sm:$0xff] %v560
        %569 = vst [vmem:[%s161 + $0x10] sm:$0xff] %v561
        %570 = vst [vmem:[%s161 + $0x18] sm:$0xff] %v562
        %571 = vst [vmem:[%s161 + $0x20] sm:$0xff] %v563
        %572 = vst [vmem:[%s161 + $0x28] sm:$0xff] %v564
        %573 = vst [vmem:[%s161 + $0x30] sm:$0xff] %v565
        %574 = vst [vmem:[%s161 + $0x38] sm:$0xff] %v566
        %s575 = sand.u32 %s87, 1
        %s576 = scalar_lea.sflag [#allocation3], %s575
        %s577 = sand.u32 %s87, 1
        %s578 = smul.addr %s577, 64
        %s579 = scalar_lea.vmem [#allocation2], %s578
        // Predicated region
        $region29: #{tpu_custom_call.1} parent=27 // pred_check
          %p580 = pneg %p97
        $region30: #{tpu_custom_call.1} parent=27 // pred_check_branch
          %582 = sbr.rel (%p580) target = $region32
        $region31: #{tpu_custom_call.1} parent=27 // pred_region
          %s583 = smul.u32 2, %s21
          %s585 = ssub.s32 1024, 1024
          %586 = vsyncadd %s576, %s585
          %s587 = smul.addr %s20, 8
          %s588 = sadd.s32 %s583, %s587
          %s589 = smul.addr %s588, 128
          %s590 = scalar_lea.hbm %s2, %s589
          %s591 = sshll.u32 %s579, 4
          %s592 = int_to_ptr.vmem [resolvable:$true] %s591
          %597 = dma.vmem_to_hbm [thread:$0]  %s592, 1024, %s590, %s576, 256, 256, 16
        $region32: #{tpu_custom_call.1} parent=27 // pred_fallthru
          _
      $region28: #{tpu_custom_call.1} parent=5 // pred_fallthru
        _
      %p598 = scmp.le.s32.totalorder 2, %s11
      // Predicated region
      $region33: #{tpu_custom_call.1} parent=5 // pred_check
        %p599 = pneg %p598
      $region34: #{tpu_custom_call.1} parent=5 // pred_check_branch
        %601 = sbr.rel (%p599) target = $region36
      $region35: #{tpu_custom_call.1} parent=5 // pred_region
        %s602 = ssub.s32 %s11, 2
        // Predicated region
        $region37: #{tpu_custom_call.1} parent=35 // pred_check
          %p603 = pneg %p103
        $region38: #{tpu_custom_call.1} parent=35 // pred_check_branch
          %605 = sbr.rel (%p603) target = $region40
        $region39: #{tpu_custom_call.1} parent=35 // pred_region
          %s606 = sand.u32 %s88, 1
          %s607 = scalar_lea.sflag [#allocation3], %s606
          %s608 = sand.u32 %s88, 1
          %s609 = smul.addr %s608, 64
          %s610 = scalar_lea.vmem [#allocation2], %s609
          %611 = dma.done %s607, 1024
        $region40: #{tpu_custom_call.1} parent=35 // pred_fallthru
          _
      $region36: #{tpu_custom_call.1} parent=5 // pred_fallthru
        _
    $region6: #{tpu_custom_call.1} parent=1 // loop_footer
      %s15 = sadd.s32 1, %s11
    $region7: #{tpu_custom_call.1} parent=1 // loop_footer_branch
      %10 = sbr.rel target = $region3
    $region8: #{tpu_custom_call.1} parent=1 // loop_exit
      _
    %612 = vsyncpa [#allocation3], 1
    %s613 = scalar_lea.sflag [#allocation3], 1
    %614 = vsyncpa %s613, 1

</llo_original>
